<compile_context>
chip_gen: v7x
topology: tpu7x:2x2x1
jax: 0.10.0
libtpu: 0.0.40
codegen_flags: <defaults>
</compile_context>

<pallas_src>
import functools

import jax
import jax.numpy as jnp
from jax.experimental import pallas as pl
from jax.experimental.pallas import tpu as pltpu

_LANES = 128
_SUBLANES = 8
_TILE_ROWS = 1024           # 1024*128*4 B = 512 KiB per array per grid step
_LOG_EPS = 1e-4             # topk_loss smooth: log(pred + 0.0001)
_DICE_EPS = 1e-5            # DiceLoss.epsilon


def _dc_topk_kernel(p_ref, t_ref, ce_ref, ip_ref, up_ref, *, tr, total_rows):
    """Per-tile body.

    p_ref, t_ref : (tr, 128) f32 — predictions / targets tile
    ce_ref       : (tr, 128) f32 — per-voxel NLL loss tile
    ip_ref       : (1, 8, 128) f32 — per-tile partial of sum(p * t)
    up_ref       : (1, 8, 128) f32 — per-tile partial of sum(p + t)
    """
    p = p_ref[...]
    t = t_ref[...]

    if total_rows % tr != 0:
        # Ragged last tile: rows past `total_rows` hold unspecified data.
        # Mask them out of the reductions (OOB ce stores are dropped by Pallas).
        i = pl.program_id(0)
        row = jax.lax.broadcasted_iota(jnp.int32, (tr, _LANES), 0) + i * tr
        valid = row < total_rows
        pm = jnp.where(valid, p, 0.0)
        tm = jnp.where(valid, t, 0.0)
    else:
        pm, tm = p, t

    # Lane/sublane-dense partial reduction: collapse tr rows onto 8 sublanes.
    # (tr, 128) -> (tr/8, 8, 128) keeps the native (8, 128) tile as the minor
    # dims, so the reshape is layout-free and the reduce is a VPU add loop.
    prod = (pm * tm).reshape(tr // _SUBLANES, _SUBLANES, _LANES)
    ssum = (pm + tm).reshape(tr // _SUBLANES, _SUBLANES, _LANES)
    ip_ref[0] = jnp.sum(prod, axis=0)
    up_ref[0] = jnp.sum(ssum, axis=0)

    # Per-voxel cross entropy of NLL(log(cat((1-p, p), dim=1) + eps), target):
    #   class 0 (floor(t) == 0) -> -log(1 - p + eps)
    #   class 1 (floor(t) == 1) -> -log(    p + eps)
    p_sel = jnp.where(t >= 1.0, p, 1.0 - p)
    ce_ref[...] = -jnp.log(p_sel + _LOG_EPS)


@functools.partial(jax.jit, static_argnames=("k",))
def dc_and_topk_loss(net_output, target, k=10):
    """JAX/Pallas equivalent of DC_and_topk_loss_3d.forward.

    net_output : (N, 1, ...) float probabilities in [0, 1]
    target     : (N, 1, ...) float (0/1) labels
    returns    : (result, ce_loss, dc_loss) scalars, result = ce + dc
    """
    assert net_output.shape == target.shape
    assert net_output.shape[1] == 1, "binary (single-channel) predictions expected"
    n_vox = int(jnp.size(net_output))  # static under jit

    p_flat = net_output.reshape(-1).astype(jnp.float32)
    t_flat = target.reshape(-1).astype(jnp.float32)

    # Pad only when needed so that rows is a multiple of 8 (<= 1023 extra
    # elements); typical segmentation volumes skip this entirely.  Zero pads
    # contribute nothing to the dice sums and are sliced off before top-k.
    block = _SUBLANES * _LANES
    pad = (-n_vox) % block
    if pad:
        p_flat = jnp.pad(p_flat, (0, pad))
        t_flat = jnp.pad(t_flat, (0, pad))
    rows = (n_vox + pad) // _LANES          # multiple of 8
    p2d = p_flat.reshape(rows, _LANES)
    t2d = t_flat.reshape(rows, _LANES)

    tr = min(_TILE_ROWS, rows)              # multiple of 8 by construction
    num_tiles = pl.cdiv(rows, tr)

    kernel = functools.partial(_dc_topk_kernel, tr=tr, total_rows=rows)

    ce_map, inter_parts, union_parts = pl.pallas_call(
        kernel,
        grid=(num_tiles,),
        in_specs=[
            pl.BlockSpec((tr, _LANES), lambda i: (i, 0)),
            pl.BlockSpec((tr, _LANES), lambda i: (i, 0)),
        ],
        out_specs=[
            pl.BlockSpec((tr, _LANES), lambda i: (i, 0)),
            pl.BlockSpec((1, _SUBLANES, _LANES), lambda i: (i, 0, 0)),
            pl.BlockSpec((1, _SUBLANES, _LANES), lambda i: (i, 0, 0)),
        ],
        out_shape=[
            jax.ShapeDtypeStruct((rows, _LANES), jnp.float32),
            jax.ShapeDtypeStruct((num_tiles, _SUBLANES, _LANES), jnp.float32),
            jax.ShapeDtypeStruct((num_tiles, _SUBLANES, _LANES), jnp.float32),
        ],
        compiler_params=pltpu.CompilerParams(
            dimension_semantics=("parallel",)),
    )(p2d, t2d)

    # ---- Dice loss (scalar glue over tiny per-tile partials) ----
    intersection = jnp.sum(inter_parts)
    union = jnp.sum(union_parts)
    dc_loss = 1.0 - 2.0 * (intersection + _DICE_EPS) / (union + _DICE_EPS)

    # ---- Top-K cross entropy ----
    ce_per_voxel = ce_map.reshape(-1)[:n_vox]       # drop lane padding tail
    n_keep = max(1, int(n_vox * k / 100))           # guard n_keep == 0
    topk_vals, _ = jax.lax.top_k(ce_per_voxel, n_keep)
    ce_loss = jnp.mean(topk_vals)

    result = ce_loss + dc_loss
    return result, ce_loss, dc_loss


def _reference(net_output, target, k=10):
    """Pure-JAX reference of the PyTorch forward (for sanity checking)."""
    p = net_output.astype(jnp.float32)
    t = target.astype(jnp.float32)
    n_vox = int(jnp.size(p))
    intersection = jnp.sum(p * t)
    union = jnp.sum(p + t)
    dc = 1.0 - 2.0 * (intersection + _DICE_EPS) / (union + _DICE_EPS)
    p_sel = jnp.where(t.reshape(-1) >= 1.0, p.reshape(-1), 1.0 - p.reshape(-1))
    ce_map = -jnp.log(p_sel + _LOG_EPS)
    n_keep = max(1, int(n_vox * k / 100))
    ce = jnp.mean(jax.lax.top_k(ce_map, n_keep)[0])
    return ce + dc, ce, dc


def _check(shape, key, tol):
    k_logits, k_tgt = jax.random.split(key)
    net_output = jax.nn.sigmoid(
        jax.random.normal(k_logits, shape, dtype=jnp.float32))
    target = jax.random.bernoulli(k_tgt, 0.4, shape).astype(jnp.float32)

    result, ce_loss, dc_loss = dc_and_topk_loss(net_output, target, k=10)
    jax.block_until_ready((result, ce_loss, dc_loss))

    ref_result, ref_ce, ref_dc = _reference(net_output, target, k=10)
    assert abs(float(result) - float(ref_result)) < tol, (shape, result, ref_result)
    assert abs(float(ce_loss) - float(ref_ce)) < tol, (shape, ce_loss, ref_ce)
    assert abs(float(dc_loss) - float(ref_dc)) < tol, (shape, dc_loss, ref_dc)


if __name__ == "__main__":
    key = jax.random.PRNGKey(0)
    k1, k2 = jax.random.split(key)

    # Small canonical 3-D shape (single tile, lane-padding path).
    _check((2, 1, 8, 16, 16), k1, tol=1e-4)
    # Larger 3-D shape exercising the multi-tile + ragged-last-tile (masked) path.
    _check((2, 1, 16, 64, 80), k2, tol=1e-3)

    print("KERNEL_OK")
</pallas_src>

<mosaic_0001>
module attributes {stable_mosaic.version = 11 : i64} {
  func.func @_dc_topk_kernel(%arg0: i32, %arg1: memref<32x128xf32, #tpu.memory_space<vmem>>, %arg2: memref<32x128xf32, #tpu.memory_space<vmem>>, %arg3: memref<32x128xf32, #tpu.memory_space<vmem>>, %arg4: memref<1x8x128xf32, #tpu.memory_space<vmem>>, %arg5: memref<1x8x128xf32, #tpu.memory_space<vmem>>) attributes {dimension_semantics = [#tpu.dimension_semantics<parallel>], iteration_bounds = array<i64: 1>, scalar_prefetch = 0 : i64, scratch_operands = 0 : i64, tpu.core_type = #tpu.core_type<tc>, window_params = [{transform_indices = @transform_0, window_bounds = array<i64: 32, 128>}, {transform_indices = @transform_1, window_bounds = array<i64: 32, 128>}, {transform_indices = @transform_2, window_bounds = array<i64: 32, 128>}, {transform_indices = @transform_3, window_bounds = array<i64: 1, 8, 128>}, {transform_indices = @transform_4, window_bounds = array<i64: 1, 8, 128>}]} {
    %c0 = arith.constant 0 : index
    %c0_0 = arith.constant 0 : index
    %0 = vector.load %arg1[%c0, %c0_0] : memref<32x128xf32, #tpu.memory_space<vmem>>, vector<32x128xf32>
    %c0_1 = arith.constant 0 : index
    %c0_2 = arith.constant 0 : index
    %1 = vector.load %arg2[%c0_1, %c0_2] : memref<32x128xf32, #tpu.memory_space<vmem>>, vector<32x128xf32>
    %2 = arith.mulf %0, %1 : vector<32x128xf32>
    %3 = vector.shape_cast %2 : vector<32x128xf32> to vector<4x8x128xf32>
    %4 = arith.addf %0, %1 : vector<32x128xf32>
    %5 = vector.shape_cast %4 : vector<32x128xf32> to vector<4x8x128xf32>
    %cst = arith.constant dense<0.000000e+00> : vector<8x128xf32>
    %6 = vector.multi_reduction <add>, %3, %cst [0] : vector<4x8x128xf32> to vector<8x128xf32>
    %c0_3 = arith.constant 0 : index
    %c0_4 = arith.constant 0 : index
    %c0_5 = arith.constant 0 : index
    %7 = vector.load %arg4[%c0_3, %c0_4, %c0_5] : memref<1x8x128xf32, #tpu.memory_space<vmem>>, vector<1x8x128xf32>
    %8 = vector.shape_cast %7 : vector<1x8x128xf32> to vector<8x128xf32>
    %9 = vector.shape_cast %6 : vector<8x128xf32> to vector<1x8x128xf32>
    tpu.vector_store %arg4[%c0_3, %c0_4, %c0_5], %9 {strides = array<i32>} : memref<1x8x128xf32, #tpu.memory_space<vmem>>, vector<1x8x128xf32>,
    %cst_6 = arith.constant dense<0.000000e+00> : vector<8x128xf32>
    %10 = vector.multi_reduction <add>, %5, %cst_6 [0] : vector<4x8x128xf32> to vector<8x128xf32>
    %c0_7 = arith.constant 0 : index
    %c0_8 = arith.constant 0 : index
    %c0_9 = arith.constant 0 : index
    %11 = vector.load %arg5[%c0_7, %c0_8, %c0_9] : memref<1x8x128xf32, #tpu.memory_space<vmem>>, vector<1x8x128xf32>
    %12 = vector.shape_cast %11 : vector<1x8x128xf32> to vector<8x128xf32>
    %13 = vector.shape_cast %10 : vector<8x128xf32> to vector<1x8x128xf32>
    tpu.vector_store %arg5[%c0_7, %c0_8, %c0_9], %13 {strides = array<i32>} : memref<1x8x128xf32, #tpu.memory_space<vmem>>, vector<1x8x128xf32>,
    %cst_10 = arith.constant 1.000000e+00 : f32
    %14 = vector.broadcast %cst_10 : f32 to vector<32x128xf32>
    %15 = arith.cmpf oge, %1, %14 : vector<32x128xf32>
    %cst_11 = arith.constant 1.000000e+00 : f32
    %16 = vector.broadcast %cst_11 : f32 to vector<32x128xf32>
    %17 = arith.subf %16, %0 : vector<32x128xf32>
    %18 = arith.select %15, %0, %17 : vector<32x128xi1>, vector<32x128xf32>
    %cst_12 = arith.constant 9.99999974E-5 : f32
    %19 = vector.broadcast %cst_12 : f32 to vector<32x128xf32>
    %20 = arith.addf %18, %19 : vector<32x128xf32>
    %21 = math.log %20 : vector<32x128xf32>
    %cst_13 = arith.constant 0.000000e+00 : f32
    %22 = vector.broadcast %cst_13 : f32 to vector<32x128xf32>
    %23 = arith.subf %22, %21 : vector<32x128xf32>
    %c0_14 = arith.constant 0 : index
    %c0_15 = arith.constant 0 : index
    %24 = vector.load %arg3[%c0_14, %c0_15] : memref<32x128xf32, #tpu.memory_space<vmem>>, vector<32x128xf32>
    tpu.vector_store %arg3[%c0_14, %c0_15], %23 {strides = array<i32>} : memref<32x128xf32, #tpu.memory_space<vmem>>, vector<32x128xf32>,
    return
  }
  func.func @transform_0(%arg0: i32) -> (i32, i32) {
    %c0_i32 = arith.constant 0 : i32
    %c0_i32_0 = arith.constant 0 : i32
    return %arg0, %c0_i32 : i32, i32
  }
  func.func @transform_1(%arg0: i32) -> (i32, i32) {
    %c0_i32 = arith.constant 0 : i32
    %c0_i32_0 = arith.constant 0 : i32
    return %arg0, %c0_i32 : i32, i32
  }
  func.func @transform_2(%arg0: i32) -> (i32, i32) {
    %c0_i32 = arith.constant 0 : i32
    %c0_i32_0 = arith.constant 0 : i32
    return %arg0, %c0_i32 : i32, i32
  }
  func.func @transform_3(%arg0: i32) -> (i32, i32, i32) {
    %c0_i32 = arith.constant 0 : i32
    %c0_i32_0 = arith.constant 0 : i32
    %c0_i32_1 = arith.constant 0 : i32
    return %arg0, %c0_i32, %c0_i32_0 : i32, i32, i32
  }
  func.func @transform_4(%arg0: i32) -> (i32, i32, i32) {
    %c0_i32 = arith.constant 0 : i32
    %c0_i32_0 = arith.constant 0 : i32
    %c0_i32_1 = arith.constant 0 : i32
    return %arg0, %c0_i32, %c0_i32_0 : i32, i32, i32
  }
}

</mosaic_0001>

<llo_original>
// kernel: dc_and_topk_loss.1
$region0: #{dc_and_topk_loss.1}
  #allocation0 [shape = 'u32[]', space=smem, size = 0x4, offset = 0x4, fixed_abs, tag = 'smem constant byte address 0x4 - core index']
  #allocation1 [shape = 'u32[144,128]{1,0:T(1,128)}', space=vmem, size = 0x12000, scoped, tag = 'internal scratch']
  %s0 = inlined_call_operand.vmem [shape: f32[32,128], index: 0, kind: input, shape index: {}]
  %s1 = inlined_call_operand.vmem [shape: f32[32,128], index: 1, kind: input, shape index: {}]
  %s2 = inlined_call_operand.vmem [shape: f32[32,128], index: 2, kind: output, shape index: {0}]
  %s3 = inlined_call_operand.vmem [shape: f32[1,8,128], index: 3, kind: output, shape index: {1}]
  %s4 = inlined_call_operand.vmem [shape: f32[1,8,128], index: 4, kind: output, shape index: {2}]
  %5 = xla_tuple %s2, %s3, %s4
  %s6 = sld [smem:[#allocation0]]
  $region34: #{dc_and_topk_loss.1} parent=0
    _
  %s8 = ssub.s32 1, %s6
  %s9 = scalar_select 0, %s8, %s6
  // Predicated region
  $region2: #{dc_and_topk_loss.1} parent=0 // pred_check
    _
  $region3: #{dc_and_topk_loss.1} parent=0 // pred_check_branch
    %11 = sbr.rel (0) target = $region5
  $region4: #{dc_and_topk_loss.1} parent=0 // pred_region
    _
  $region5: #{dc_and_topk_loss.1} parent=0 // pred_fallthru
    _
  // Predicated region
  $region6: #{dc_and_topk_loss.1} parent=0 // pred_check
    _
  $region7: #{dc_and_topk_loss.1} parent=0 // pred_check_branch
    %13 = sbr.rel (0) target = $region9
  $region8: #{dc_and_topk_loss.1} parent=0 // pred_region
    _
  $region9: #{dc_and_topk_loss.1} parent=0 // pred_fallthru
    _
  %v14 = vld [vmem:[%s0] sm:$0xff]
  %v15 = vld [vmem:[%s0 + $0x8] sm:$0xff]
  %v16 = vld [vmem:[%s0 + $0x10] sm:$0xff]
  %v17 = vld [vmem:[%s0 + $0x18] sm:$0xff]
  %v18 = vld [vmem:[%s1] sm:$0xff]
  %v19 = vld [vmem:[%s1 + $0x8] sm:$0xff]
  %v20 = vld [vmem:[%s1 + $0x10] sm:$0xff]
  %v21 = vld [vmem:[%s1 + $0x18] sm:$0xff]
  %v22 = vmul.f32 %v14, %v18
  %v23 = vmul.f32 %v15, %v19
  %v24 = vmul.f32 %v16, %v20
  %v25 = vmul.f32 %v17, %v21
  %v26 = vadd.f32 %v14, %v18
  %v27 = vadd.f32 %v15, %v19
  %v28 = vadd.f32 %v16, %v20
  %v29 = vadd.f32 %v17, %v21
  %v30 = vadd.f32 %v22, %v23
  %v31 = vadd.f32 %v30, %v24
  %v32 = vadd.f32 %v31, %v25
  %33 = vst [vmem:[%s3] sm:$0xff] %v32
  %v34 = vadd.f32 %v26, %v27
  %v35 = vadd.f32 %v34, %v28
  %v36 = vadd.f32 %v35, %v29
  %37 = vst [vmem:[%s4] sm:$0xff] %v36
  %vm38 = vcmp.ge.f32.partialorder %v18, 1.0
  %vm39 = vcmp.ge.f32.partialorder %v19, 1.0
  %vm40 = vcmp.ge.f32.partialorder %v20, 1.0
  %vm41 = vcmp.ge.f32.partialorder %v21, 1.0
  %v42 = vsub.f32 1.0, %v14
  %v43 = vsub.f32 1.0, %v15
  %v44 = vsub.f32 1.0, %v16
  %v45 = vsub.f32 1.0, %v17
  %v46 = vsel %vm38, %v14, %v42
  %v47 = vsel %vm39, %v15, %v43
  %v48 = vsel %vm40, %v16, %v44
  %v49 = vsel %vm41, %v17, %v45
  %v50 = vadd.f32 %v46, 0.0001
  %v51 = vadd.f32 %v47, 0.0001
  %v52 = vadd.f32 %v48, 0.0001
  %v53 = vadd.f32 %v49, 0.0001
  %v54 = vlog2.pop %v50
  %v55 = vmul.f32 %v54, 0.6931472
  %v56 = vlog2.pop %v51
  %v57 = vmul.f32 %v56, 0.6931472
  %v58 = vlog2.pop %v52
  %v59 = vmul.f32 %v58, 0.6931472
  %v60 = vlog2.pop %v53
  %v61 = vmul.f32 %v60, 0.6931472
  %v62 = vsub.f32 0.0, %v55
  %v63 = vsub.f32 0.0, %v57
  %v64 = vsub.f32 0.0, %v59
  %v65 = vsub.f32 0.0, %v61
  %66 = vst [vmem:[%s2] sm:$0xff] %v62
  %67 = vst [vmem:[%s2 + $0x8] sm:$0xff] %v63
  %68 = vst [vmem:[%s2 + $0x10] sm:$0xff] %v64
  %69 = vst [vmem:[%s2 + $0x18] sm:$0xff] %v65
  // Predicated region
  $region10: #{dc_and_topk_loss.1} parent=0 // pred_check
    _
  $region11: #{dc_and_topk_loss.1} parent=0 // pred_check_branch
    %71 = sbr.rel (0) target = $region13
  $region12: #{dc_and_topk_loss.1} parent=0 // pred_region
    _
  $region13: #{dc_and_topk_loss.1} parent=0 // pred_fallthru
    _
  // Predicated region
  $region14: #{dc_and_topk_loss.1} parent=0 // pred_check
    _
  $region15: #{dc_and_topk_loss.1} parent=0 // pred_check_branch
    %73 = sbr.rel (0) target = $region17
  $region16: #{dc_and_topk_loss.1} parent=0 // pred_region
    _
  $region17: #{dc_and_topk_loss.1} parent=0 // pred_fallthru
    _
  // Predicated region
  $region18: #{dc_and_topk_loss.1} parent=0 // pred_check
    _
  $region19: #{dc_and_topk_loss.1} parent=0 // pred_check_branch
    %75 = sbr.rel (0) target = $region21
  $region20: #{dc_and_topk_loss.1} parent=0 // pred_region
    _
  $region21: #{dc_and_topk_loss.1} parent=0 // pred_fallthru
    _
  // Predicated region
  $region22: #{dc_and_topk_loss.1} parent=0 // pred_check
    _
  $region23: #{dc_and_topk_loss.1} parent=0 // pred_check_branch
    %77 = sbr.rel (0) target = $region25
  $region24: #{dc_and_topk_loss.1} parent=0 // pred_region
    _
  $region25: #{dc_and_topk_loss.1} parent=0 // pred_fallthru
    _
  // Predicated region
  $region26: #{dc_and_topk_loss.1} parent=0 // pred_check
    _
  $region27: #{dc_and_topk_loss.1} parent=0 // pred_check_branch
    %79 = sbr.rel (0) target = $region29
  $region28: #{dc_and_topk_loss.1} parent=0 // pred_region
    _
  $region29: #{dc_and_topk_loss.1} parent=0 // pred_fallthru
    _
  // Predicated region
  $region30: #{dc_and_topk_loss.1} parent=0 // pred_check
    _
  $region31: #{dc_and_topk_loss.1} parent=0 // pred_check_branch
    %81 = sbr.rel (0) target = $region33
  $region32: #{dc_and_topk_loss.1} parent=0 // pred_region
    _
  $region33: #{dc_and_topk_loss.1} parent=0 // pred_fallthru
    _

</llo_original>
